<compile_context>
chip_gen: v6e
topology: v6e:2x2x1
jax: 0.10.0
libtpu: 0.0.40
codegen_flags: <defaults>
</compile_context>

<pallas_src>
import jax
import jax.numpy as jnp
from jax.experimental import pallas as pl
from jax.experimental.pallas import tpu as pltpu

EPS = 1e-5
MOMENTUM = 0.95

_LANE = 128
# Per-tile VMEM budget for the double-buffered (N, TF) x / y slabs.
_TILE_BUDGET_BYTES = 16 * 1024 * 1024
# Explicit scoped-VMEM limit: safe on v5e/v6e (128 MiB physical) and v7x (64 MiB).
_VMEM_LIMIT_BYTES = 32 * 1024 * 1024


def _bn_train_kernel(x_ref, gamma_ref, beta_ref, mm_ref, mv_ref,
                     y_ref, new_mm_ref, new_mv_ref):
    x = x_ref[...].astype(jnp.float32)            # (N, TF)
    gamma = gamma_ref[...].astype(jnp.float32)    # (1, TF)
    beta = beta_ref[...].astype(jnp.float32)      # (1, TF)
    mm = mm_ref[...].astype(jnp.float32)          # (1, TF)
    mv = mv_ref[...].astype(jnp.float32)          # (1, TF)

    inv_n = 1.0 / x.shape[0]
    mean = jnp.sum(x, axis=0, keepdims=True) * inv_n          # (1, TF)
    xc = x - mean                                             # reused for var and y
    var = jnp.sum(xc * xc, axis=0, keepdims=True) * inv_n     # biased, f32 accum

    # Fold gamma / inv_std into one per-feature scale: y = xc*scale + beta.
    scale = gamma * jax.lax.rsqrt(var + EPS)                  # rsqrt -> EUP slot (free)
    y_ref[...] = (xc * scale + beta).astype(y_ref.dtype)

    new_mm_ref[...] = (MOMENTUM * mm + (1.0 - MOMENTUM) * mean).astype(new_mm_ref.dtype)
    new_mv_ref[...] = (MOMENTUM * mv + (1.0 - MOMENTUM) * var).astype(new_mv_ref.dtype)


def _choose_tile_f(n, f, x_bytes, y_bytes):
    """Largest lane-multiple feature tile whose double-buffered x/y slabs fit the budget."""
    per_lane = 2 * n * (x_bytes + y_bytes)   # 2 pipeline buffers x (x slab + y slab)
    max_tf = max(_LANE, (_TILE_BUDGET_BYTES // max(per_lane, 1)) // _LANE * _LANE)
    f_lanes = pl.cdiv(f, _LANE) * _LANE
    return min(max_tf, f_lanes)
    # TODO(synk): for N so large that even TF=128 exceeds VMEM, switch to the
    # two-pass (F, N)-tiled sum/sum-of-squares accumulator structure.


def batch_norm_forward(x, gamma, beta, moving_mean, moving_var):
    """Training-mode BatchNorm forward. Returns (Y, new_moving_mean, new_moving_var)."""
    n, f = x.shape
    assert gamma.shape == (1, f) and beta.shape == (1, f)
    assert moving_mean.shape == (1, f) and moving_var.shape == (1, f)

    tf = _choose_tile_f(n, f, x.dtype.itemsize, x.dtype.itemsize)
    f_pad = pl.cdiv(f, tf) * tf
    pad = f_pad - f
    if pad:
        # Lane-dense padding; padded features are independent and sliced off below.
        x = jnp.pad(x, ((0, 0), (0, pad)))
        gamma = jnp.pad(gamma, ((0, 0), (0, pad)))
        beta = jnp.pad(beta, ((0, 0), (0, pad)))
        moving_mean = jnp.pad(moving_mean, ((0, 0), (0, pad)))
        moving_var = jnp.pad(moving_var, ((0, 0), (0, pad)))

    col = lambda j: (0, j)
    x_spec = pl.BlockSpec((n, tf), col)        # full N per block (reduction over dim 0)
    vec_spec = pl.BlockSpec((1, tf), col)

    y, new_mm, new_mv = pl.pallas_call(
        _bn_train_kernel,
        out_shape=(
            jax.ShapeDtypeStruct((n, f_pad), x.dtype),
            jax.ShapeDtypeStruct((1, f_pad), moving_mean.dtype),
            jax.ShapeDtypeStruct((1, f_pad), moving_var.dtype),
        ),
        grid=(f_pad // tf,),
        in_specs=[x_spec, vec_spec, vec_spec, vec_spec, vec_spec],
        out_specs=(x_spec, vec_spec, vec_spec),
        # Reuse the running-stat buffers instead of allocating fresh HBM outputs.
        input_output_aliases={3: 1, 4: 2},
        compiler_params=pltpu.CompilerParams(
            dimension_semantics=("parallel",),   # v7x: shard F tiles across both TCs
            vmem_limit_bytes=_VMEM_LIMIT_BYTES,
        ),
    )(x, gamma, beta, moving_mean, moving_var)

    if pad:
        y = y[:, :f]
        new_mm = new_mm[:, :f]
        new_mv = new_mv[:, :f]
    return y, new_mm, new_mv


# TODO(synk): eval-mode path ((X - moving_mean)/sqrt(moving_var+eps)) is the same
# elementwise kernel without the reduction; omitted since nn.Module defaults to
# training mode.


if __name__ == "__main__":
    key = jax.random.PRNGKey(0)
    batch, num_features = 8, 32

    x = jax.random.normal(key, (batch, num_features), dtype=jnp.float32)

    # Deterministic parameter init matching the module's __init__.
    gamma = jnp.ones((1, num_features), dtype=jnp.float32)
    beta = jnp.zeros((1, num_features), dtype=jnp.float32)
    moving_mean = jnp.zeros((1, num_features), dtype=jnp.float32)
    moving_var = jnp.zeros((1, num_features), dtype=jnp.float32)

    y, new_mm, new_mv = batch_norm_forward(x, gamma, beta, moving_mean, moving_var)
    jax.block_until_ready((y, new_mm, new_mv))

    # Pure-JAX reference (training branch of the module's batch_norm).
    mean_ref = jnp.mean(x, axis=0, keepdims=True)
    var_ref = jnp.mean((x - mean_ref) ** 2, axis=0, keepdims=True)
    y_ref = gamma * (x - mean_ref) / jnp.sqrt(var_ref + EPS) + beta
    mm_ref = MOMENTUM * moving_mean + (1.0 - MOMENTUM) * mean_ref
    mv_ref = MOMENTUM * moving_var + (1.0 - MOMENTUM) * var_ref

    assert jnp.allclose(y, y_ref, atol=1e-5, rtol=1e-5)
    assert jnp.allclose(new_mm, mm_ref, atol=1e-6, rtol=1e-6)
    assert jnp.allclose(new_mv, mv_ref, atol=1e-6, rtol=1e-6)

    print("KERNEL_OK")
</pallas_src>

<mosaic_0001>
module attributes {stable_mosaic.version = 11 : i64} {
  func.func @_bn_train_kernel(%arg0: i32, %arg1: memref<8x128xf32, #tpu.memory_space<vmem>>, %arg2: memref<1x128xf32, #tpu.memory_space<vmem>>, %arg3: memref<1x128xf32, #tpu.memory_space<vmem>>, %arg4: memref<1x128xf32, #tpu.memory_space<vmem>>, %arg5: memref<1x128xf32, #tpu.memory_space<vmem>>, %arg6: memref<8x128xf32, #tpu.memory_space<vmem>>, %arg7: memref<1x128xf32, #tpu.memory_space<vmem>>, %arg8: memref<1x128xf32, #tpu.memory_space<vmem>>) attributes {dimension_semantics = [#tpu.dimension_semantics<parallel>], iteration_bounds = array<i64: 1>, scalar_prefetch = 0 : i64, scratch_operands = 0 : i64, tpu.core_type = #tpu.core_type<tc>, window_params = [{transform_indices = @transform_0, window_bounds = array<i64: 8, 128>}, {transform_indices = @transform_1, window_bounds = array<i64: 1, 128>}, {transform_indices = @transform_2, window_bounds = array<i64: 1, 128>}, {transform_indices = @transform_3, window_bounds = array<i64: 1, 128>}, {transform_indices = @transform_4, window_bounds = array<i64: 1, 128>}, {transform_indices = @transform_5, window_bounds = array<i64: 8, 128>}, {transform_indices = @transform_6, window_bounds = array<i64: 1, 128>}, {transform_indices = @transform_7, window_bounds = array<i64: 1, 128>}]} {
    %c0 = arith.constant 0 : index
    %c0_0 = arith.constant 0 : index
    %0 = vector.load %arg1[%c0, %c0_0] : memref<8x128xf32, #tpu.memory_space<vmem>>, vector<8x128xf32>
    %c0_1 = arith.constant 0 : index
    %c0_2 = arith.constant 0 : index
    %1 = vector.load %arg2[%c0_1, %c0_2] : memref<1x128xf32, #tpu.memory_space<vmem>>, vector<1x128xf32>
    %c0_3 = arith.constant 0 : index
    %c0_4 = arith.constant 0 : index
    %2 = vector.load %arg3[%c0_3, %c0_4] : memref<1x128xf32, #tpu.memory_space<vmem>>, vector<1x128xf32>
    %c0_5 = arith.constant 0 : index
    %c0_6 = arith.constant 0 : index
    %3 = vector.load %arg4[%c0_5, %c0_6] : memref<1x128xf32, #tpu.memory_space<vmem>>, vector<1x128xf32>
    %c0_7 = arith.constant 0 : index
    %c0_8 = arith.constant 0 : index
    %4 = vector.load %arg5[%c0_7, %c0_8] : memref<1x128xf32, #tpu.memory_space<vmem>>, vector<1x128xf32>
    %cst = arith.constant dense<0.000000e+00> : vector<128xf32>
    %5 = vector.multi_reduction <add>, %0, %cst [0] : vector<8x128xf32> to vector<128xf32>
    %6 = vector.shape_cast %5 : vector<128xf32> to vector<1x128xf32>
    %cst_9 = arith.constant 1.250000e-01 : f32
    %7 = vector.broadcast %cst_9 : f32 to vector<1x128xf32>
    %8 = arith.mulf %6, %7 : vector<1x128xf32>
    %9 = vector.broadcast %8 : vector<1x128xf32> to vector<8x128xf32>
    %10 = arith.subf %0, %9 : vector<8x128xf32>
    %11 = arith.mulf %10, %10 : vector<8x128xf32>
    %cst_10 = arith.constant dense<0.000000e+00> : vector<128xf32>
    %12 = vector.multi_reduction <add>, %11, %cst_10 [0] : vector<8x128xf32> to vector<128xf32>
    %13 = vector.shape_cast %12 : vector<128xf32> to vector<1x128xf32>
    %cst_11 = arith.constant 1.250000e-01 : f32
    %14 = vector.broadcast %cst_11 : f32 to vector<1x128xf32>
    %15 = arith.mulf %13, %14 : vector<1x128xf32>
    %cst_12 = arith.constant 9.99999974E-6 : f32
    %16 = vector.broadcast %cst_12 : f32 to vector<1x128xf32>
    %17 = arith.addf %15, %16 : vector<1x128xf32>
    %18 = math.rsqrt %17 : vector<1x128xf32>
    %19 = arith.mulf %1, %18 : vector<1x128xf32>
    %20 = vector.broadcast %19 : vector<1x128xf32> to vector<8x128xf32>
    %21 = arith.mulf %10, %20 : vector<8x128xf32>
    %22 = vector.broadcast %2 : vector<1x128xf32> to vector<8x128xf32>
    %23 = arith.addf %21, %22 : vector<8x128xf32>
    %c0_13 = arith.constant 0 : index
    %c0_14 = arith.constant 0 : index
    %24 = vector.load %arg6[%c0_13, %c0_14] : memref<8x128xf32, #tpu.memory_space<vmem>>, vector<8x128xf32>
    tpu.vector_store %arg6[%c0_13, %c0_14], %23 {strides = array<i32>} : memref<8x128xf32, #tpu.memory_space<vmem>>, vector<8x128xf32>,
    %cst_15 = arith.constant 0.949999988 : f32
    %25 = vector.broadcast %cst_15 : f32 to vector<1x128xf32>
    %26 = arith.mulf %25, %3 : vector<1x128xf32>
    %cst_16 = arith.constant 5.000000e-02 : f32
    %27 = vector.broadcast %cst_16 : f32 to vector<1x128xf32>
    %28 = arith.mulf %27, %8 : vector<1x128xf32>
    %29 = arith.addf %26, %28 : vector<1x128xf32>
    %c0_17 = arith.constant 0 : index
    %c0_18 = arith.constant 0 : index
    %30 = vector.load %arg7[%c0_17, %c0_18] : memref<1x128xf32, #tpu.memory_space<vmem>>, vector<1x128xf32>
    tpu.vector_store %arg7[%c0_17, %c0_18], %29 {strides = array<i32>} : memref<1x128xf32, #tpu.memory_space<vmem>>, vector<1x128xf32>,
    %cst_19 = arith.constant 0.949999988 : f32
    %31 = vector.broadcast %cst_19 : f32 to vector<1x128xf32>
    %32 = arith.mulf %31, %4 : vector<1x128xf32>
    %cst_20 = arith.constant 5.000000e-02 : f32
    %33 = vector.broadcast %cst_20 : f32 to vector<1x128xf32>
    %34 = arith.mulf %33, %15 : vector<1x128xf32>
    %35 = arith.addf %32, %34 : vector<1x128xf32>
    %c0_21 = arith.constant 0 : index
    %c0_22 = arith.constant 0 : index
    %36 = vector.load %arg8[%c0_21, %c0_22] : memref<1x128xf32, #tpu.memory_space<vmem>>, vector<1x128xf32>
    tpu.vector_store %arg8[%c0_21, %c0_22], %35 {strides = array<i32>} : memref<1x128xf32, #tpu.memory_space<vmem>>, vector<1x128xf32>,
    return
  }
  func.func @transform_0(%arg0: i32) -> (i32, i32) {
    %c0_i32 = arith.constant 0 : i32
    %c0_i32_0 = arith.constant 0 : i32
    return %c0_i32, %arg0 : i32, i32
  }
  func.func @transform_1(%arg0: i32) -> (i32, i32) {
    %c0_i32 = arith.constant 0 : i32
    %c0_i32_0 = arith.constant 0 : i32
    return %c0_i32, %arg0 : i32, i32
  }
  func.func @transform_2(%arg0: i32) -> (i32, i32) {
    %c0_i32 = arith.constant 0 : i32
    %c0_i32_0 = arith.constant 0 : i32
    return %c0_i32, %arg0 : i32, i32
  }
  func.func @transform_3(%arg0: i32) -> (i32, i32) {
    %c0_i32 = arith.constant 0 : i32
    %c0_i32_0 = arith.constant 0 : i32
    return %c0_i32, %arg0 : i32, i32
  }
  func.func @transform_4(%arg0: i32) -> (i32, i32) {
    %c0_i32 = arith.constant 0 : i32
    %c0_i32_0 = arith.constant 0 : i32
    return %c0_i32, %arg0 : i32, i32
  }
  func.func @transform_5(%arg0: i32) -> (i32, i32) {
    %c0_i32 = arith.constant 0 : i32
    %c0_i32_0 = arith.constant 0 : i32
    return %c0_i32, %arg0 : i32, i32
  }
  func.func @transform_6(%arg0: i32) -> (i32, i32) {
    %c0_i32 = arith.constant 0 : i32
    %c0_i32_0 = arith.constant 0 : i32
    return %c0_i32, %arg0 : i32, i32
  }
  func.func @transform_7(%arg0: i32) -> (i32, i32) {
    %c0_i32 = arith.constant 0 : i32
    %c0_i32_0 = arith.constant 0 : i32
    return %c0_i32, %arg0 : i32, i32
  }
}

</mosaic_0001>

<llo_original>
// kernel: tpu_custom_call.1
$region0: #{tpu_custom_call.1}
  #allocation0 [shape = 'u32[]', space=smem, size = 0x4, offset = 0x4, fixed_abs, tag = 'smem constant byte address 0x4 - core index']
  #allocation1 [shape = 'u32[144,128]{1,0:T(1,128)}', space=vmem, size = 0x12000, scoped, tag = 'internal scratch']
  %s0 = inlined_call_operand.vmem [shape: f32[8,128], index: 0, kind: input, shape index: {}]
  %s1 = inlined_call_operand.vmem [shape: f32[1,128], index: 1, kind: input, shape index: {}]
  %s2 = inlined_call_operand.vmem [shape: f32[1,128], index: 2, kind: input, shape index: {}]
  %s3 = inlined_call_operand.hbm [shape: f32[1,128], index: 3, kind: input, shape index: {}, may-alias: {3,6}]
  %s4 = inlined_call_operand.hbm [shape: f32[1,128], index: 4, kind: input, shape index: {}, may-alias: {4,7}]
  %s5 = inlined_call_operand.hbm [shape: f32[8,128], index: 5, kind: output, shape index: {0}]
  %s6 = inlined_call_operand.hbm [shape: f32[1,128], index: 6, kind: output, shape index: {1}, may-alias: {3,6}]
  %s7 = inlined_call_operand.hbm [shape: f32[1,128], index: 7, kind: output, shape index: {2}, may-alias: {4,7}]
  %8 = xla_tuple %s5, %s6, %s7
  %s9 = sld [smem:[#allocation0]]
  $region54: #{tpu_custom_call.1} parent=0
    _
  %s11 = ssub.s32 1, %s9
  %s12 = scalar_select 0, %s11, %s9
  $region1: #{tpu_custom_call.1} parent=0
    #allocation2 [shape = 'u8[512]{0}', space=vmem, size = 0x400, scoped, tag = 'input window, operand 3, single buffered']
    #allocation3 [shape = 's32[1]{0}', space=sflag, size = 0x4, scoped, tag = 'scoped memory for tpu_custom_call.1']
    #allocation4 [shape = 's32[1]{0}', space=sflag, size = 0x4, scoped, tag = 'scoped memory for tpu_custom_call.1']
    #allocation5 [shape = 'u8[512]{0}', space=vmem, size = 0x400, scoped, tag = 'input window, operand 4, single buffered']
    #allocation6 [shape = 's32[1]{0}', space=sflag, size = 0x4, scoped, tag = 'scoped memory for tpu_custom_call.1']
    #allocation7 [shape = 'u8[4096]{0}', space=vmem, size = 0x1000, scoped, tag = 'output window, operand 0, single buffered']
    #allocation8 [shape = 'u8[512]{0}', space=vmem, size = 0x400, scoped, tag = 'output window, operand 1, single buffered']
    #allocation9 [shape = 's32[1]{0}', space=sflag, size = 0x4, scoped, tag = 'scoped memory for tpu_custom_call.1']
    #allocation10 [shape = 'u8[512]{0}', space=vmem, size = 0x400, scoped, tag = 'output window, operand 2, single buffered']
    %13 = vsyncpa [#allocation3], 0
    %14 = vsyncpa [#allocation6], 0
    %15 = vsyncpa [#allocation4], 0
    %16 = vsyncpa [#allocation9], 0
    // Predicated region
    $region2: #{tpu_custom_call.1} parent=1 // pred_check
      _
    $region3: #{tpu_custom_call.1} parent=1 // pred_check_branch
      %18 = sbr.rel (0) target = $region5
    $region4: #{tpu_custom_call.1} parent=1 // pred_region
      _
    $region5: #{tpu_custom_call.1} parent=1 // pred_fallthru
      _
    // Predicated region
    $region6: #{tpu_custom_call.1} parent=1 // pred_check
      _
    $region7: #{tpu_custom_call.1} parent=1 // pred_check_branch
      %20 = sbr.rel (0) target = $region9
    $region8: #{tpu_custom_call.1} parent=1 // pred_region
      _
    $region9: #{tpu_custom_call.1} parent=1 // pred_fallthru
      _
    // Predicated region
    $region10: #{tpu_custom_call.1} parent=1 // pred_check
      _
    $region11: #{tpu_custom_call.1} parent=1 // pred_check_branch
      %22 = sbr.rel (0) target = $region13
    $region12: #{tpu_custom_call.1} parent=1 // pred_region
      _
    $region13: #{tpu_custom_call.1} parent=1 // pred_fallthru
      _
    // Predicated region
    $region14: #{tpu_custom_call.1} parent=1 // pred_check
      _
    $region15: #{tpu_custom_call.1} parent=1 // pred_check_branch
      %24 = sbr.rel (0) target = $region17
    $region16: #{tpu_custom_call.1} parent=1 // pred_region
      %s26 = ssub.s32 16, 16
      %27 = vsyncadd [#allocation3], %s26
      %s29 = sshll.u32 [#allocation2], 4
      %s30 = int_to_ptr.vmem [resolvable:$true] %s29
      %32 = dma.hbm_to_vmem [thread:$0]  %s3, 16, %s30, [#allocation3]
    $region17: #{tpu_custom_call.1} parent=1 // pred_fallthru
      _
    // Predicated region
    $region18: #{tpu_custom_call.1} parent=1 // pred_check
      _
    $region19: #{tpu_custom_call.1} parent=1 // pred_check_branch
      %34 = sbr.rel (0) target = $region21
    $region20: #{tpu_custom_call.1} parent=1 // pred_region
      %s36 = ssub.s32 16, 16
      %37 = vsyncadd [#allocation6], %s36
      %s39 = sshll.u32 [#allocation5], 4
      %s40 = int_to_ptr.vmem [resolvable:$true] %s39
      %42 = dma.hbm_to_vmem [thread:$0]  %s4, 16, %s40, [#allocation6]
    $region21: #{tpu_custom_call.1} parent=1 // pred_fallthru
      _
    // Predicated region
    $region22: #{tpu_custom_call.1} parent=1 // pred_check
      _
    $region23: #{tpu_custom_call.1} parent=1 // pred_check_branch
      %44 = sbr.rel (0) target = $region25
    $region24: #{tpu_custom_call.1} parent=1 // pred_region
      %45 = dma.done [#allocation3], 16
    $region25: #{tpu_custom_call.1} parent=1 // pred_fallthru
      _
    // Predicated region
    $region26: #{tpu_custom_call.1} parent=1 // pred_check
      _
    $region27: #{tpu_custom_call.1} parent=1 // pred_check_branch
      %47 = sbr.rel (0) target = $region29
    $region28: #{tpu_custom_call.1} parent=1 // pred_region
      %48 = dma.done [#allocation6], 16
    $region29: #{tpu_custom_call.1} parent=1 // pred_fallthru
      _
    %v49 = vld [vmem:[%s0] sm:$0xff]
    %v50 = vld [vmem:[%s1] sm:$0x1]
    %v51 = vld [vmem:[%s2] sm:$0x1]
    %v52 = vld [vmem:[#allocation2] sm:$0x1]
    %v53 = vld [vmem:[#allocation5] sm:$0x1]
    %v54 = vrot.slane %v49, 4
    %v55 = vadd.f32 %v49, %v54
    %v56 = vrot.slane %v55, 2
    %v57 = vadd.f32 %v55, %v56
    %v58 = vrot.slane %v57, 1
    %v59 = vadd.f32 %v57, %v58
    %v60 = vmul.f32 %v59, 0.125
    %v61 = vsub.f32 %v49, %v60
    %v62 = vmul.f32 %v61, %v61
    %v63 = vrot.slane %v62, 4
    %v64 = vadd.f32 %v62, %v63
    %v65 = vrot.slane %v64, 2
    %v66 = vadd.f32 %v64, %v65
    %v67 = vrot.slane %v66, 1
    %v68 = vadd.f32 %v66, %v67
    %v69 = vmul.f32 %v68, 0.125
    %v70 = vadd.f32 %v69, 1e-05
    %v71 = vrsqrt.pop %v70
    %v72 = vmul.f32 %v50, %v71
    %v74 = vlaneseq
    %v75 = vshrl.u32 %v74, 7
    %v76 = vsub.s32 0, %v75
    %v77 = vrot.slane %v72, %v76
    %v79 = vmul.f32 %v61, %v77
    %v81 = vlaneseq
    %v82 = vshrl.u32 %v81, 7
    %v83 = vsub.s32 0, %v82
    %v84 = vrot.slane %v51, %v83
    %v86 = vadd.f32 %v79, %v84
    %87 = vst [vmem:[#allocation7] sm:$0xff] %v86
    %v88 = vmul.f32 %v52, 0.95
    %v89 = vmul.f32 %v60, 0.05
    %v90 = vadd.f32 %v88, %v89
    %91 = vst [vmem:[#allocation8] sm:$0x1] %v90
    %v92 = vmul.f32 %v53, 0.95
    %v93 = vmul.f32 %v69, 0.05
    %v94 = vadd.f32 %v92, %v93
    %95 = vst [vmem:[#allocation10] sm:$0x1] %v94
    // Predicated region
    $region30: #{tpu_custom_call.1} parent=1 // pred_check
      _
    $region31: #{tpu_custom_call.1} parent=1 // pred_check_branch
      %97 = sbr.rel (0) target = $region33
    $region32: #{tpu_custom_call.1} parent=1 // pred_region
      %s99 = ssub.s32 128, 128
      %100 = vsyncadd [#allocation4], %s99
      %s102 = sshll.u32 [#allocation7], 4
      %s103 = int_to_ptr.vmem [resolvable:$true] %s102
      %105 = dma.vmem_to_hbm [thread:$0]  %s103, 128, %s5, [#allocation4]
    $region33: #{tpu_custom_call.1} parent=1 // pred_fallthru
      _
    // Predicated region
    $region34: #{tpu_custom_call.1} parent=1 // pred_check
      _
    $region35: #{tpu_custom_call.1} parent=1 // pred_check_branch
      %107 = sbr.rel (0) target = $region37
    $region36: #{tpu_custom_call.1} parent=1 // pred_region
      %s109 = ssub.s32 16, 16
      %110 = vsyncadd [#allocation9], %s109
      %s112 = sshll.u32 [#allocation8], 4
      %s113 = int_to_ptr.vmem [resolvable:$true] %s112
      %115 = dma.vmem_to_hbm [thread:$0]  %s113, 16, %s6, [#allocation9]
    $region37: #{tpu_custom_call.1} parent=1 // pred_fallthru
      _
    // Predicated region
    $region38: #{tpu_custom_call.1} parent=1 // pred_check
      _
    $region39: #{tpu_custom_call.1} parent=1 // pred_check_branch
      %117 = sbr.rel (0) target = $region41
    $region40: #{tpu_custom_call.1} parent=1 // pred_region
      %s119 = ssub.s32 16, 16
      %120 = vsyncadd [#allocation9], %s119
      %s122 = sshll.u32 [#allocation10], 4
      %s123 = int_to_ptr.vmem [resolvable:$true] %s122
      %125 = dma.vmem_to_hbm [thread:$0]  %s123, 16, %s7, [#allocation9]
    $region41: #{tpu_custom_call.1} parent=1 // pred_fallthru
      _
    // Predicated region
    $region42: #{tpu_custom_call.1} parent=1 // pred_check
      _
    $region43: #{tpu_custom_call.1} parent=1 // pred_check_branch
      %127 = sbr.rel (0) target = $region45
    $region44: #{tpu_custom_call.1} parent=1 // pred_region
      %128 = dma.done [#allocation4], 128
    $region45: #{tpu_custom_call.1} parent=1 // pred_fallthru
      _
    // Predicated region
    $region46: #{tpu_custom_call.1} parent=1 // pred_check
      _
    $region47: #{tpu_custom_call.1} parent=1 // pred_check_branch
      %130 = sbr.rel (0) target = $region49
    $region48: #{tpu_custom_call.1} parent=1 // pred_region
      %131 = dma.done [#allocation9], 16
    $region49: #{tpu_custom_call.1} parent=1 // pred_fallthru
      _
    // Predicated region
    $region50: #{tpu_custom_call.1} parent=1 // pred_check
      _
    $region51: #{tpu_custom_call.1} parent=1 // pred_check_branch
      %133 = sbr.rel (0) target = $region53
    $region52: #{tpu_custom_call.1} parent=1 // pred_region
      %134 = dma.done [#allocation9], 16
    $region53: #{tpu_custom_call.1} parent=1 // pred_fallthru
      _
    %135 = vsyncpa [#allocation3], 1
    %136 = vsyncpa [#allocation6], 1
    %137 = vsyncpa [#allocation4], 1
    %138 = vsyncpa [#allocation9], 1

</llo_original>
